<compile_context>
chip_gen: v7x
topology: tpu7x:2x2x1
jax: 0.10.0
libtpu: 0.0.40
codegen_flags: <defaults>
</compile_context>

<pallas_src>
import math
import numpy as np
import jax
import jax.numpy as jnp
from jax import lax
from jax.experimental import pallas as pl
from jax.experimental.pallas import tpu as pltpu

# ---------------- configuration (small, consistent with RobertaConfig) -------
BATCH = 2
SEQ = 8
HIDDEN = 32
NUM_HEADS = 4
HEAD_DIM = HIDDEN // NUM_HEADS
INTERMEDIATE = 64
LN_EPS = 1e-5                        # RobertaConfig default layer_norm_eps
TOKENS = BATCH * SEQ                 # rows of the flattened activation slab
ROWS = NUM_HEADS * TOKENS            # rows of the head-flattened attention slab

SEQ_SHIFT = SEQ.bit_length() - 1
TOK_SHIFT = TOKENS.bit_length() - 1
HD_SHIFT = HEAD_DIM.bit_length() - 1
assert SEQ == (1 << SEQ_SHIFT), "SEQ must be a power of two (mask uses shifts)"
assert TOKENS == (1 << TOK_SHIFT), "BATCH*SEQ must be a power of two"
assert HEAD_DIM == (1 << HD_SHIFT), "HEAD_DIM must be a power of two"


def _layer_norm(x, gamma, beta, eps):
    mean = jnp.mean(x, axis=-1, keepdims=True)
    var = jnp.mean((x - mean) ** 2, axis=-1, keepdims=True)
    return (x - mean) * lax.rsqrt(var + eps) * gamma + beta


def _gelu_exact(x):
    # HF "gelu" activation = exact erf-based GELU (used by the reference).
    return 0.5 * x * (1.0 + lax.erf(x * (1.0 / math.sqrt(2.0))))


def _gelu_tanh(x):
    # tanh approximation: tanh/exp run in the EUP slot instead of a VALU
    # erf polynomial; numerics delta ~1e-3 vs exact erf GELU.
    c = 0.7978845608028654  # sqrt(2/pi)
    return 0.5 * x * (1.0 + jnp.tanh(c * (x + 0.044715 * x * x * x)))


def roberta_layer_kernel(
    x_ref,                       # (TOKENS, HIDDEN)            f32
    wq_ref, wk_ref, wv_ref,      # (HIDDEN, HIDDEN)            bf16 (wq pre-scaled)
    wo_ref,                      # (HIDDEN, HIDDEN)            bf16
    wi_ref,                      # (HIDDEN, INTERMEDIATE)      bf16
    wff_ref,                     # (INTERMEDIATE, HIDDEN)      bf16
    bias_ref,                    # (10, INTERMEDIATE)          f32 packed slab
    out_ref,                     # (TOKENS, HIDDEN)            f32
):
    x = x_ref[...]                                   # (T, H) f32
    xb = x.astype(jnp.bfloat16)

    slab = bias_ref[...]                             # one load for all biases/LN
    bq = slab[0:1, 0:HIDDEN]                         # already scaled by 1/sqrt(dh)
    bk = slab[1:2, 0:HIDDEN]
    bv = slab[2:3, 0:HIDDEN]
    bo = slab[3:4, 0:HIDDEN]
    ln1g = slab[4:5, 0:HIDDEN]
    ln1b = slab[5:6, 0:HIDDEN]
    bi = slab[6:7, 0:INTERMEDIATE]
    bff = slab[7:8, 0:HIDDEN]
    ln2g = slab[8:9, 0:HIDDEN]
    ln2b = slab[9:10, 0:HIDDEN]

    # ---- QKV projections: (T,H) x (H,H) bf16 MXU matmuls, f32 accumulation --
    q = jnp.dot(xb, wq_ref[...], preferred_element_type=jnp.float32) + bq
    k = jnp.dot(xb, wk_ref[...], preferred_element_type=jnp.float32) + bk
    v = jnp.dot(xb, wv_ref[...], preferred_element_type=jnp.float32) + bv

    qb = q.astype(jnp.bfloat16)
    kb = k.astype(jnp.bfloat16)
    vb = v.astype(jnp.bfloat16)

    # ---- head-flattened attention layout: row r = h*TOKENS + t --------------
    # Q is tiled unmasked; K/V are tiled and column-masked so row block h only
    # carries head-h feature columns.  Then ONE matmul produces every head's
    # scores and ONE matmul every head's context (off-head pairs are removed
    # by the additive mask below).
    q_big = jnp.concatenate([qb] * NUM_HEADS, axis=0)            # (R, H)
    k_rep = jnp.concatenate([kb] * NUM_HEADS, axis=0)            # (R, H)
    v_rep = jnp.concatenate([vb] * NUM_HEADS, axis=0)            # (R, H)

    r_i = lax.broadcasted_iota(jnp.int32, (ROWS, HIDDEN), 0)
    c_i = lax.broadcasted_iota(jnp.int32, (ROWS, HIDDEN), 1)
    head_cols = (r_i >> TOK_SHIFT) == (c_i >> HD_SHIFT)          # (R, H) bool
    k_big = jnp.where(head_cols, k_rep, jnp.zeros_like(k_rep))
    v_big = jnp.where(head_cols, v_rep, jnp.zeros_like(v_rep))

    # Block-diagonal additive mask.  With row r = h*TOKENS + b*SEQ + s, the
    # group id (r >> SEQ_SHIFT) = h*BATCH + b encodes BOTH head and batch, so
    # one "same group" test enforces head separation and batch separation.
    row = lax.broadcasted_iota(jnp.int32, (ROWS, ROWS), 0)
    col = lax.broadcasted_iota(jnp.int32, (ROWS, ROWS), 1)
    same_grp = (row >> SEQ_SHIFT) == (col >> SEQ_SHIFT)
    neg = jnp.where(same_grp, 0.0, -1e30).astype(jnp.float32)    # (R, R)

    # ---- attention: one scores matmul + masked softmax + one PV matmul ------
    scores = lax.dot_general(                                    # (R, R) f32
        q_big, k_big, dimension_numbers=(((1,), (1,)), ((), ())),
        preferred_element_type=jnp.float32) + neg
    m = jnp.max(scores, axis=-1, keepdims=True)
    p = jnp.exp(scores - m)
    p = p * pl.reciprocal(jnp.sum(p, axis=-1, keepdims=True), approx=True)
    ctx_big = jnp.dot(p.astype(jnp.bfloat16), v_big,
                      preferred_element_type=jnp.float32)        # (R, H)

    # Merge heads: each row block holds its head's (disjoint) column slice,
    # so the merge is a sum of aligned sublane row blocks.
    ctx = ctx_big[0:TOKENS, :]
    for h in range(1, NUM_HEADS):
        ctx = ctx + ctx_big[h * TOKENS:(h + 1) * TOKENS, :]      # (T, H)

    # ---- RobertaSelfOutput: dense -> (dropout=id) -> LayerNorm(res + input) -
    attn_out = jnp.dot(ctx.astype(jnp.bfloat16), wo_ref[...],
                       preferred_element_type=jnp.float32) + bo
    h1 = _layer_norm(attn_out + x, ln1g, ln1b, LN_EPS)

    # ---- RobertaIntermediate: dense -> GELU (tanh approx, EUP) --------------
    inter = _gelu_tanh(
        jnp.dot(h1.astype(jnp.bfloat16), wi_ref[...],
                preferred_element_type=jnp.float32) + bi)

    # ---- RobertaOutput: dense -> (dropout=id) -> LayerNorm(res + input) -----
    ffn = jnp.dot(inter.astype(jnp.bfloat16), wff_ref[...],
                  preferred_element_type=jnp.float32) + bff
    h2 = _layer_norm(ffn + h1, ln2g, ln2b, LN_EPS)

    out_ref[...] = h2.astype(out_ref.dtype)


def prepare_params(params):
    """One-time offline prep: fold 1/sqrt(head_dim) into the query projection,
    cast weight matrices to bf16 for the MXU, and pack every small bias /
    LayerNorm vector into a single (10, INTERMEDIATE) f32 slab (one DMA)."""
    scale = 1.0 / math.sqrt(HEAD_DIM)
    small = [
        params["bq"].reshape(-1) * scale,   # row 0
        params["bk"].reshape(-1),           # row 1
        params["bv"].reshape(-1),           # row 2
        params["bo"].reshape(-1),           # row 3
        params["ln1_g"].reshape(-1),        # row 4
        params["ln1_b"].reshape(-1),        # row 5
        params["bi"].reshape(-1),           # row 6 (width INTERMEDIATE)
        params["bff"].reshape(-1),          # row 7
        params["ln2_g"].reshape(-1),        # row 8
        params["ln2_b"].reshape(-1),        # row 9
    ]
    slab = jnp.zeros((len(small), INTERMEDIATE), jnp.float32)
    for r, vec in enumerate(small):
        slab = slab.at[r, : vec.shape[0]].set(vec)
    return {
        "wq": (params["wq"] * scale).astype(jnp.bfloat16),
        "wk": params["wk"].astype(jnp.bfloat16),
        "wv": params["wv"].astype(jnp.bfloat16),
        "wo": params["wo"].astype(jnp.bfloat16),
        "wi": params["wi"].astype(jnp.bfloat16),
        "wff": params["wff"].astype(jnp.bfloat16),
        "bias_slab": slab,
    }


def roberta_layer(x, prepared):
    B, S, H = x.shape
    T = B * S
    x2 = x.reshape(T, H)   # wrapper-side reshape = free layout plumbing

    # Single invocation, no grid: every operand (x, weights, bias slab, out)
    # is brought into VMEM exactly once and single-buffered — no pipeline, so
    # no pointless double-buffering of grid-invariant weights.
    # TODO(synk): for a multi-layer stack, fold layers into one pallas_call
    # with a leading layer grid axis (or a cross-call weight-prefetch future)
    # so each layer's weight DMA hides behind the previous layer's compute.
    out2 = pl.pallas_call(
        roberta_layer_kernel,
        out_shape=jax.ShapeDtypeStruct((T, H), x.dtype),
        compiler_params=pltpu.CompilerParams(vmem_limit_bytes=32 * 1024 * 1024),
    )(x2, prepared["wq"], prepared["wk"], prepared["wv"], prepared["wo"],
      prepared["wi"], prepared["wff"], prepared["bias_slab"])
    return out2.reshape(B, S, H)


# ---------------- pure-JAX reference (f32, exact erf GELU, unfolded scale) ---
def roberta_layer_ref(x, params):
    q = x @ params["wq"] + params["bq"]
    k = x @ params["wk"] + params["bk"]
    v = x @ params["wv"] + params["bv"]
    B, S, H = x.shape

    def split(t):  # (B,S,H) -> (B,nh,S,dh)
        return t.reshape(B, S, NUM_HEADS, HEAD_DIM).transpose(0, 2, 1, 3)

    qh, kh, vh = split(q), split(k), split(v)
    scores = jnp.einsum("bhqd,bhkd->bhqk", qh, kh) / math.sqrt(HEAD_DIM)
    probs = jax.nn.softmax(scores, axis=-1)
    ctx = jnp.einsum("bhqk,bhkd->bhqd", probs, vh)
    ctx = ctx.transpose(0, 2, 1, 3).reshape(B, S, H)

    attn_out = ctx @ params["wo"] + params["bo"]
    h1 = _layer_norm(attn_out + x, params["ln1_g"], params["ln1_b"], LN_EPS)
    inter = _gelu_exact(h1 @ params["wi"] + params["bi"])
    ffn = inter @ params["wff"] + params["bff"]
    return _layer_norm(ffn + h1, params["ln2_g"], params["ln2_b"], LN_EPS)


def init_params(key):
    ks = jax.random.split(key, 10)
    s = 0.05
    return {
        # attention projections (stored [in, out], i.e. pre-transposed)
        "wq": jax.random.normal(ks[0], (HIDDEN, HIDDEN), jnp.float32) * s,
        "bq": jax.random.normal(ks[1], (1, HIDDEN), jnp.float32) * s,
        "wk": jax.random.normal(ks[2], (HIDDEN, HIDDEN), jnp.float32) * s,
        "bk": jax.random.normal(ks[3], (1, HIDDEN), jnp.float32) * s,
        "wv": jax.random.normal(ks[4], (HIDDEN, HIDDEN), jnp.float32) * s,
        "bv": jax.random.normal(ks[5], (1, HIDDEN), jnp.float32) * s,
        # self-output dense + LayerNorm
        "wo": jax.random.normal(ks[6], (HIDDEN, HIDDEN), jnp.float32) * s,
        "bo": jnp.zeros((1, HIDDEN), jnp.float32),
        "ln1_g": jnp.ones((1, HIDDEN), jnp.float32),
        "ln1_b": jnp.zeros((1, HIDDEN), jnp.float32),
        # intermediate + output dense + LayerNorm
        "wi": jax.random.normal(ks[7], (HIDDEN, INTERMEDIATE), jnp.float32) * s,
        "bi": jax.random.normal(ks[8], (1, INTERMEDIATE), jnp.float32) * s,
        "wff": jax.random.normal(ks[9], (INTERMEDIATE, HIDDEN), jnp.float32) * s,
        "bff": jnp.zeros((1, HIDDEN), jnp.float32),
        "ln2_g": jnp.ones((1, HIDDEN), jnp.float32),
        "ln2_b": jnp.zeros((1, HIDDEN), jnp.float32),
    }


if __name__ == "__main__":
    key = jax.random.PRNGKey(0)
    k_x, k_p = jax.random.split(key)
    x = jax.random.normal(k_x, (BATCH, SEQ, HIDDEN), jnp.float32)
    params = init_params(k_p)
    prepared = prepare_params(params)       # offline: fold scale, bf16, pack biases

    out = jax.block_until_ready(roberta_layer(x, prepared))
    ref = jax.block_until_ready(roberta_layer_ref(x, params))

    assert out.shape == (BATCH, SEQ, HIDDEN)
    # bf16 matmuls, approx-reciprocal softmax and tanh-GELU vs the f32/erf
    # reference: keep a 2e-2 tolerance.
    assert np.allclose(np.asarray(out), np.asarray(ref), rtol=2e-2, atol=2e-2), (
        "mismatch vs reference")

    print("KERNEL_OK")
</pallas_src>

<mosaic_0001>
module attributes {stable_mosaic.version = 11 : i64} {
  func.func @roberta_layer_kernel(%arg0: memref<16x32xf32, #tpu.memory_space<vmem>>, %arg1: memref<32x32xbf16, #tpu.memory_space<vmem>>, %arg2: memref<32x32xbf16, #tpu.memory_space<vmem>>, %arg3: memref<32x32xbf16, #tpu.memory_space<vmem>>, %arg4: memref<32x32xbf16, #tpu.memory_space<vmem>>, %arg5: memref<32x64xbf16, #tpu.memory_space<vmem>>, %arg6: memref<64x32xbf16, #tpu.memory_space<vmem>>, %arg7: memref<10x64xf32, #tpu.memory_space<vmem>>, %arg8: memref<16x32xf32, #tpu.memory_space<vmem>>) attributes {dimension_semantics = [], scalar_prefetch = 0 : i64, scratch_operands = 0 : i64, tpu.core_type = #tpu.core_type<tc>} {
    %c0 = arith.constant 0 : index
    %c0_0 = arith.constant 0 : index
    %0 = vector.load %arg0[%c0, %c0_0] : memref<16x32xf32, #tpu.memory_space<vmem>>, vector<16x32xf32>
    %1 = arith.truncf %0 : vector<16x32xf32> to vector<16x32xbf16>
    %c0_1 = arith.constant 0 : index
    %c0_2 = arith.constant 0 : index
    %2 = vector.load %arg7[%c0_1, %c0_2] : memref<10x64xf32, #tpu.memory_space<vmem>>, vector<10x64xf32>
    %3 = vector.extract_strided_slice %2 {offsets = [0, 0], sizes = [1, 32], strides = [1, 1]} : vector<10x64xf32> to vector<1x32xf32>
    %4 = vector.extract_strided_slice %2 {offsets = [1, 0], sizes = [1, 32], strides = [1, 1]} : vector<10x64xf32> to vector<1x32xf32>
    %5 = vector.extract_strided_slice %2 {offsets = [2, 0], sizes = [1, 32], strides = [1, 1]} : vector<10x64xf32> to vector<1x32xf32>
    %6 = vector.extract_strided_slice %2 {offsets = [3, 0], sizes = [1, 32], strides = [1, 1]} : vector<10x64xf32> to vector<1x32xf32>
    %7 = vector.extract_strided_slice %2 {offsets = [4, 0], sizes = [1, 32], strides = [1, 1]} : vector<10x64xf32> to vector<1x32xf32>
    %8 = vector.extract_strided_slice %2 {offsets = [5, 0], sizes = [1, 32], strides = [1, 1]} : vector<10x64xf32> to vector<1x32xf32>
    %9 = vector.extract_strided_slice %2 {offsets = [6, 0], sizes = [1, 64], strides = [1, 1]} : vector<10x64xf32> to vector<1x64xf32>
    %10 = vector.extract_strided_slice %2 {offsets = [7, 0], sizes = [1, 32], strides = [1, 1]} : vector<10x64xf32> to vector<1x32xf32>
    %11 = vector.extract_strided_slice %2 {offsets = [8, 0], sizes = [1, 32], strides = [1, 1]} : vector<10x64xf32> to vector<1x32xf32>
    %12 = vector.extract_strided_slice %2 {offsets = [9, 0], sizes = [1, 32], strides = [1, 1]} : vector<10x64xf32> to vector<1x32xf32>
    %c0_3 = arith.constant 0 : index
    %c0_4 = arith.constant 0 : index
    %13 = vector.load %arg1[%c0_3, %c0_4] : memref<32x32xbf16, #tpu.memory_space<vmem>>, vector<32x32xbf16>
    %cst = arith.constant dense<0.000000e+00> : vector<16x32xf32>
    %14 = tpu.matmul %1, %13, %cst {dimension_numbers = #tpu.dot_dimension_numbers<[1], [0], [0], [1], [0, 0, 1, 1], [], []>} : vector<16x32xbf16>, vector<32x32xbf16>, vector<16x32xf32> -> vector<16x32xf32>
    %15 = vector.broadcast %3 : vector<1x32xf32> to vector<16x32xf32>
    %16 = arith.addf %14, %15 : vector<16x32xf32>
    %c0_5 = arith.constant 0 : index
    %c0_6 = arith.constant 0 : index
    %17 = vector.load %arg2[%c0_5, %c0_6] : memref<32x32xbf16, #tpu.memory_space<vmem>>, vector<32x32xbf16>
    %cst_7 = arith.constant dense<0.000000e+00> : vector<16x32xf32>
    %18 = tpu.matmul %1, %17, %cst_7 {dimension_numbers = #tpu.dot_dimension_numbers<[1], [0], [0], [1], [0, 0, 1, 1], [], []>} : vector<16x32xbf16>, vector<32x32xbf16>, vector<16x32xf32> -> vector<16x32xf32>
    %19 = vector.broadcast %4 : vector<1x32xf32> to vector<16x32xf32>
    %20 = arith.addf %18, %19 : vector<16x32xf32>
    %c0_8 = arith.constant 0 : index
    %c0_9 = arith.constant 0 : index
    %21 = vector.load %arg3[%c0_8, %c0_9] : memref<32x32xbf16, #tpu.memory_space<vmem>>, vector<32x32xbf16>
    %cst_10 = arith.constant dense<0.000000e+00> : vector<16x32xf32>
    %22 = tpu.matmul %1, %21, %cst_10 {dimension_numbers = #tpu.dot_dimension_numbers<[1], [0], [0], [1], [0, 0, 1, 1], [], []>} : vector<16x32xbf16>, vector<32x32xbf16>, vector<16x32xf32> -> vector<16x32xf32>
    %23 = vector.broadcast %5 : vector<1x32xf32> to vector<16x32xf32>
    %24 = arith.addf %22, %23 : vector<16x32xf32>
    %25 = arith.truncf %16 : vector<16x32xf32> to vector<16x32xbf16>
    %26 = arith.truncf %20 : vector<16x32xf32> to vector<16x32xbf16>
    %27 = arith.truncf %24 : vector<16x32xf32> to vector<16x32xbf16>
    %28 = tpu.concatenate %25, %25, %25, %25 in 0 : vector<16x32xbf16>, vector<16x32xbf16>, vector<16x32xbf16>, vector<16x32xbf16> -> vector<64x32xbf16>
    %29 = tpu.concatenate %26, %26, %26, %26 in 0 : vector<16x32xbf16>, vector<16x32xbf16>, vector<16x32xbf16>, vector<16x32xbf16> -> vector<64x32xbf16>
    %30 = tpu.concatenate %27, %27, %27, %27 in 0 : vector<16x32xbf16>, vector<16x32xbf16>, vector<16x32xbf16>, vector<16x32xbf16> -> vector<64x32xbf16>
    %31 = tpu.iota {dimensions = array<i32: 0>} : vector<64x32xi32>
    %32 = tpu.iota {dimensions = array<i32: 1>} : vector<64x32xi32>
    %c4_i32 = arith.constant 4 : i32
    %33 = vector.broadcast %c4_i32 : i32 to vector<64x32xi32>
    %34 = arith.shrsi %31, %33 : vector<64x32xi32>
    %c3_i32 = arith.constant 3 : i32
    %35 = vector.broadcast %c3_i32 : i32 to vector<64x32xi32>
    %36 = arith.shrsi %32, %35 : vector<64x32xi32>
    %37 = arith.cmpi eq, %34, %36 : vector<64x32xi32>
    %cst_11 = arith.constant 0.000000e+00 : bf16
    %38 = vector.broadcast %cst_11 : bf16 to vector<64x32xbf16>
    %39 = arith.select %37, %29, %38 : vector<64x32xi1>, vector<64x32xbf16>
    %cst_12 = arith.constant 0.000000e+00 : bf16
    %40 = vector.broadcast %cst_12 : bf16 to vector<64x32xbf16>
    %41 = arith.select %37, %30, %40 : vector<64x32xi1>, vector<64x32xbf16>
    %42 = tpu.iota {dimensions = array<i32: 0>} : vector<64x64xi32>
    %43 = tpu.iota {dimensions = array<i32: 1>} : vector<64x64xi32>
    %c3_i32_13 = arith.constant 3 : i32
    %44 = vector.broadcast %c3_i32_13 : i32 to vector<64x64xi32>
    %45 = arith.shrsi %42, %44 : vector<64x64xi32>
    %c3_i32_14 = arith.constant 3 : i32
    %46 = vector.broadcast %c3_i32_14 : i32 to vector<64x64xi32>
    %47 = arith.shrsi %43, %46 : vector<64x64xi32>
    %48 = arith.cmpi eq, %45, %47 : vector<64x64xi32>
    %cst_15 = arith.constant 0.000000e+00 : f32
    %cst_16 = arith.constant -1.000000e+30 : f32
    %49 = vector.broadcast %cst_15 : f32 to vector<64x64xf32>
    %50 = vector.broadcast %cst_16 : f32 to vector<64x64xf32>
    %51 = arith.select %48, %49, %50 : vector<64x64xi1>, vector<64x64xf32>
    %cst_17 = arith.constant dense<0.000000e+00> : vector<64x64xf32>
    %52 = tpu.matmul %28, %39, %cst_17 {dimension_numbers = #tpu.dot_dimension_numbers<[1], [1], [0], [0], [0, 0, 1, 0], [], []>} : vector<64x32xbf16>, vector<64x32xbf16>, vector<64x64xf32> -> vector<64x64xf32>
    %53 = arith.addf %52, %51 : vector<64x64xf32>
    %cst_18 = arith.constant dense<0xFF800000> : vector<64xf32>
    %54 = vector.multi_reduction <maximumf>, %53, %cst_18 [1] : vector<64x64xf32> to vector<64xf32>
    %55 = vector.shape_cast %54 : vector<64xf32> to vector<64x1xf32>
    %56 = vector.broadcast %55 : vector<64x1xf32> to vector<64x64xf32>
    %57 = arith.subf %53, %56 : vector<64x64xf32>
    %58 = math.exp %57 : vector<64x64xf32>
    %cst_19 = arith.constant dense<0.000000e+00> : vector<64xf32>
    %59 = vector.multi_reduction <add>, %58, %cst_19 [1] : vector<64x64xf32> to vector<64xf32>
    %60 = vector.shape_cast %59 : vector<64xf32> to vector<64x1xf32>
    %61 = tpu.reciprocal %60 {approx = true} : vector<64x1xf32> -> vector<64x1xf32>
    %62 = vector.broadcast %61 : vector<64x1xf32> to vector<64x64xf32>
    %63 = arith.mulf %58, %62 : vector<64x64xf32>
    %64 = arith.truncf %63 : vector<64x64xf32> to vector<64x64xbf16>
    %cst_20 = arith.constant dense<0.000000e+00> : vector<64x32xf32>
    %65 = tpu.matmul %64, %41, %cst_20 {dimension_numbers = #tpu.dot_dimension_numbers<[1], [0], [0], [1], [0, 0, 1, 1], [], []>} : vector<64x64xbf16>, vector<64x32xbf16>, vector<64x32xf32> -> vector<64x32xf32>
    %66 = vector.extract_strided_slice %65 {offsets = [0, 0], sizes = [16, 32], strides = [1, 1]} : vector<64x32xf32> to vector<16x32xf32>
    %67 = vector.extract_strided_slice %65 {offsets = [16, 0], sizes = [16, 32], strides = [1, 1]} : vector<64x32xf32> to vector<16x32xf32>
    %68 = arith.addf %66, %67 : vector<16x32xf32>
    %69 = vector.extract_strided_slice %65 {offsets = [32, 0], sizes = [16, 32], strides = [1, 1]} : vector<64x32xf32> to vector<16x32xf32>
    %70 = arith.addf %68, %69 : vector<16x32xf32>
    %71 = vector.extract_strided_slice %65 {offsets = [48, 0], sizes = [16, 32], strides = [1, 1]} : vector<64x32xf32> to vector<16x32xf32>
    %72 = arith.addf %70, %71 : vector<16x32xf32>
    %73 = arith.truncf %72 : vector<16x32xf32> to vector<16x32xbf16>
    %c0_21 = arith.constant 0 : index
    %c0_22 = arith.constant 0 : index
    %74 = vector.load %arg4[%c0_21, %c0_22] : memref<32x32xbf16, #tpu.memory_space<vmem>>, vector<32x32xbf16>
    %cst_23 = arith.constant dense<0.000000e+00> : vector<16x32xf32>
    %75 = tpu.matmul %73, %74, %cst_23 {dimension_numbers = #tpu.dot_dimension_numbers<[1], [0], [0], [1], [0, 0, 1, 1], [], []>} : vector<16x32xbf16>, vector<32x32xbf16>, vector<16x32xf32> -> vector<16x32xf32>
    %76 = vector.broadcast %6 : vector<1x32xf32> to vector<16x32xf32>
    %77 = arith.addf %75, %76 : vector<16x32xf32>
    %78 = arith.addf %77, %0 : vector<16x32xf32>
    %cst_24 = arith.constant dense<0.000000e+00> : vector<16xf32>
    %79 = vector.multi_reduction <add>, %78, %cst_24 [1] : vector<16x32xf32> to vector<16xf32>
    %80 = vector.shape_cast %79 : vector<16xf32> to vector<16x1xf32>
    %cst_25 = arith.constant 3.200000e+01 : f32
    %81 = vector.broadcast %cst_25 : f32 to vector<16x1xf32>
    %82 = arith.divf %80, %81 : vector<16x1xf32>
    %83 = vector.broadcast %82 : vector<16x1xf32> to vector<16x32xf32>
    %84 = arith.subf %78, %83 : vector<16x32xf32>
    %85 = arith.mulf %84, %84 : vector<16x32xf32>
    %cst_26 = arith.constant dense<0.000000e+00> : vector<16xf32>
    %86 = vector.multi_reduction <add>, %85, %cst_26 [1] : vector<16x32xf32> to vector<16xf32>
    %87 = vector.shape_cast %86 : vector<16xf32> to vector<16x1xf32>
    %cst_27 = arith.constant 3.200000e+01 : f32
    %88 = vector.broadcast %cst_27 : f32 to vector<16x1xf32>
    %89 = arith.divf %87, %88 : vector<16x1xf32>
    %90 = vector.broadcast %82 : vector<16x1xf32> to vector<16x32xf32>
    %91 = arith.subf %78, %90 : vector<16x32xf32>
    %cst_28 = arith.constant 9.99999974E-6 : f32
    %92 = vector.broadcast %cst_28 : f32 to vector<16x1xf32>
    %93 = arith.addf %89, %92 : vector<16x1xf32>
    %94 = math.rsqrt %93 : vector<16x1xf32>
    %95 = vector.broadcast %94 : vector<16x1xf32> to vector<16x32xf32>
    %96 = arith.mulf %91, %95 : vector<16x32xf32>
    %97 = vector.broadcast %7 : vector<1x32xf32> to vector<16x32xf32>
    %98 = arith.mulf %96, %97 : vector<16x32xf32>
    %99 = vector.broadcast %8 : vector<1x32xf32> to vector<16x32xf32>
    %100 = arith.addf %98, %99 : vector<16x32xf32>
    %101 = arith.truncf %100 : vector<16x32xf32> to vector<16x32xbf16>
    %c0_29 = arith.constant 0 : index
    %c0_30 = arith.constant 0 : index
    %102 = vector.load %arg5[%c0_29, %c0_30] : memref<32x64xbf16, #tpu.memory_space<vmem>>, vector<32x64xbf16>
    %cst_31 = arith.constant dense<0.000000e+00> : vector<16x64xf32>
    %103 = tpu.matmul %101, %102, %cst_31 {dimension_numbers = #tpu.dot_dimension_numbers<[1], [0], [0], [1], [0, 0, 1, 1], [], []>} : vector<16x32xbf16>, vector<32x64xbf16>, vector<16x64xf32> -> vector<16x64xf32>
    %104 = vector.broadcast %9 : vector<1x64xf32> to vector<16x64xf32>
    %105 = arith.addf %103, %104 : vector<16x64xf32>
    %cst_32 = arith.constant 5.000000e-01 : f32
    %106 = vector.broadcast %cst_32 : f32 to vector<16x64xf32>
    %107 = arith.mulf %106, %105 : vector<16x64xf32>
    %cst_33 = arith.constant 4.471500e-02 : f32
    %108 = vector.broadcast %cst_33 : f32 to vector<16x64xf32>
    %109 = arith.mulf %108, %105 : vector<16x64xf32>
    %110 = arith.mulf %109, %105 : vector<16x64xf32>
    %111 = arith.mulf %110, %105 : vector<16x64xf32>
    %112 = arith.addf %105, %111 : vector<16x64xf32>
    %cst_34 = arith.constant 0.797884583 : f32
    %113 = vector.broadcast %cst_34 : f32 to vector<16x64xf32>
    %114 = arith.mulf %113, %112 : vector<16x64xf32>
    %115 = math.tanh %114 : vector<16x64xf32>
    %cst_35 = arith.constant 1.000000e+00 : f32
    %116 = vector.broadcast %cst_35 : f32 to vector<16x64xf32>
    %117 = arith.addf %116, %115 : vector<16x64xf32>
    %118 = arith.mulf %107, %117 : vector<16x64xf32>
    %119 = arith.truncf %118 : vector<16x64xf32> to vector<16x64xbf16>
    %c0_36 = arith.constant 0 : index
    %c0_37 = arith.constant 0 : index
    %120 = vector.load %arg6[%c0_36, %c0_37] : memref<64x32xbf16, #tpu.memory_space<vmem>>, vector<64x32xbf16>
    %cst_38 = arith.constant dense<0.000000e+00> : vector<16x32xf32>
    %121 = tpu.matmul %119, %120, %cst_38 {dimension_numbers = #tpu.dot_dimension_numbers<[1], [0], [0], [1], [0, 0, 1, 1], [], []>} : vector<16x64xbf16>, vector<64x32xbf16>, vector<16x32xf32> -> vector<16x32xf32>
    %122 = vector.broadcast %10 : vector<1x32xf32> to vector<16x32xf32>
    %123 = arith.addf %121, %122 : vector<16x32xf32>
    %124 = arith.addf %123, %100 : vector<16x32xf32>
    %cst_39 = arith.constant dense<0.000000e+00> : vector<16xf32>
    %125 = vector.multi_reduction <add>, %124, %cst_39 [1] : vector<16x32xf32> to vector<16xf32>
    %126 = vector.shape_cast %125 : vector<16xf32> to vector<16x1xf32>
    %cst_40 = arith.constant 3.200000e+01 : f32
    %127 = vector.broadcast %cst_40 : f32 to vector<16x1xf32>
    %128 = arith.divf %126, %127 : vector<16x1xf32>
    %129 = vector.broadcast %128 : vector<16x1xf32> to vector<16x32xf32>
    %130 = arith.subf %124, %129 : vector<16x32xf32>
    %131 = arith.mulf %130, %130 : vector<16x32xf32>
    %cst_41 = arith.constant dense<0.000000e+00> : vector<16xf32>
    %132 = vector.multi_reduction <add>, %131, %cst_41 [1] : vector<16x32xf32> to vector<16xf32>
    %133 = vector.shape_cast %132 : vector<16xf32> to vector<16x1xf32>
    %cst_42 = arith.constant 3.200000e+01 : f32
    %134 = vector.broadcast %cst_42 : f32 to vector<16x1xf32>
    %135 = arith.divf %133, %134 : vector<16x1xf32>
    %136 = vector.broadcast %128 : vector<16x1xf32> to vector<16x32xf32>
    %137 = arith.subf %124, %136 : vector<16x32xf32>
    %cst_43 = arith.constant 9.99999974E-6 : f32
    %138 = vector.broadcast %cst_43 : f32 to vector<16x1xf32>
    %139 = arith.addf %135, %138 : vector<16x1xf32>
    %140 = math.rsqrt %139 : vector<16x1xf32>
    %141 = vector.broadcast %140 : vector<16x1xf32> to vector<16x32xf32>
    %142 = arith.mulf %137, %141 : vector<16x32xf32>
    %143 = vector.broadcast %11 : vector<1x32xf32> to vector<16x32xf32>
    %144 = arith.mulf %142, %143 : vector<16x32xf32>
    %145 = vector.broadcast %12 : vector<1x32xf32> to vector<16x32xf32>
    %146 = arith.addf %144, %145 : vector<16x32xf32>
    %c0_44 = arith.constant 0 : index
    %c0_45 = arith.constant 0 : index
    %147 = vector.load %arg8[%c0_44, %c0_45] : memref<16x32xf32, #tpu.memory_space<vmem>>, vector<16x32xf32>
    tpu.vector_store %arg8[%c0_44, %c0_45], %146 {strides = array<i32>} : memref<16x32xf32, #tpu.memory_space<vmem>>, vector<16x32xf32>,
    return
  }
}

</mosaic_0001>

<llo_original>
// kernel: tpu_custom_call.1
$region0: #{tpu_custom_call.1}
  #allocation0 [shape = 'u32[]', space=smem, size = 0x4, offset = 0x4, fixed_abs, tag = 'smem constant byte address 0x4 - core index']
  #allocation1 [shape = 'u32[144,128]{1,0:T(1,128)}', space=vmem, size = 0x12000, scoped, tag = 'internal scratch']
  %s0 = inlined_call_operand.vmem [shape: f32[16,32], index: 0, kind: input, shape index: {}]
  %s1 = inlined_call_operand.vmem [shape: bf16[32,32], index: 1, kind: input, shape index: {}]
  %s2 = inlined_call_operand.vmem [shape: bf16[32,32], index: 2, kind: input, shape index: {}]
  %s3 = inlined_call_operand.hbm [shape: bf16[32,32], index: 3, kind: input, shape index: {}]
  %s4 = inlined_call_operand.hbm [shape: bf16[32,32], index: 4, kind: input, shape index: {}]
  %s5 = inlined_call_operand.hbm [shape: bf16[32,64], index: 5, kind: input, shape index: {}]
  %s6 = inlined_call_operand.vmem [shape: bf16[64,32], index: 6, kind: input, shape index: {}]
  %s7 = inlined_call_operand.hbm [shape: f32[10,64], index: 7, kind: input, shape index: {}]
  %s8 = inlined_call_operand.hbm [shape: f32[16,32], index: 8, kind: output, shape index: {}]
  %s9 = sld [smem:[#allocation0]]
  $region58: #{tpu_custom_call.1} parent=0
    _
  %s11 = ssub.s32 1, %s9
  %s12 = scalar_select 0, %s11, %s9
  $region1: #{tpu_custom_call.1} parent=0
    #allocation2 [shape = 'u8[8192]{0}', space=vmem, size = 0x2000, scoped, tag = 'input window, operand 3, single buffered']
    #allocation3 [shape = 's32[1]{0}', space=sflag, size = 0x4, scoped, tag = 'scoped memory for tpu_custom_call.1']
    #allocation4 [shape = 's32[1]{0}', space=sflag, size = 0x4, scoped, tag = 'scoped memory for tpu_custom_call.1']
    #allocation5 [shape = 'u8[8192]{0}', space=vmem, size = 0x2000, scoped, tag = 'input window, operand 4, single buffered']
    #allocation6 [shape = 's32[1]{0}', space=sflag, size = 0x4, scoped, tag = 'scoped memory for tpu_custom_call.1']
    #allocation7 [shape = 'u8[8192]{0}', space=vmem, size = 0x2000, scoped, tag = 'input window, operand 5, single buffered']
    #allocation8 [shape = 'u8[8192]{0}', space=vmem, size = 0x2000, scoped, tag = 'input window, operand 7, single buffered']
    #allocation9 [shape = 's32[1]{0}', space=sflag, size = 0x4, scoped, tag = 'scoped memory for tpu_custom_call.1']
    #allocation10 [shape = 'u8[8192]{0}', space=vmem, size = 0x2000, scoped, tag = 'output window, operand 0, single buffered']
    %13 = vsyncpa [#allocation3], 0
    %14 = vsyncpa [#allocation6], 0
    %15 = vsyncpa [#allocation9], 0
    %16 = vsyncpa [#allocation4], 0
    // Predicated region
    $region2: #{tpu_custom_call.1} parent=1 // pred_check
      _
    $region3: #{tpu_custom_call.1} parent=1 // pred_check_branch
      %18 = sbr.rel (0) target = $region5
    $region4: #{tpu_custom_call.1} parent=1 // pred_region
      _
    $region5: #{tpu_custom_call.1} parent=1 // pred_fallthru
      _
    // Predicated region
    $region6: #{tpu_custom_call.1} parent=1 // pred_check
      _
    $region7: #{tpu_custom_call.1} parent=1 // pred_check_branch
      %20 = sbr.rel (0) target = $region9
    $region8: #{tpu_custom_call.1} parent=1 // pred_region
      _
    $region9: #{tpu_custom_call.1} parent=1 // pred_fallthru
      _
    // Predicated region
    $region10: #{tpu_custom_call.1} parent=1 // pred_check
      _
    $region11: #{tpu_custom_call.1} parent=1 // pred_check_branch
      %22 = sbr.rel (0) target = $region13
    $region12: #{tpu_custom_call.1} parent=1 // pred_region
      _
    $region13: #{tpu_custom_call.1} parent=1 // pred_fallthru
      _
    // Predicated region
    $region14: #{tpu_custom_call.1} parent=1 // pred_check
      _
    $region15: #{tpu_custom_call.1} parent=1 // pred_check_branch
      %24 = sbr.rel (0) target = $region17
    $region16: #{tpu_custom_call.1} parent=1 // pred_region
      %s26 = ssub.s32 256, 256
      %27 = vsyncadd [#allocation3], %s26
      %s28 = sshll.u32 [#allocation2], 4
      %s29 = int_to_ptr.vmem [resolvable:$true] %s28
      %34 = dma.hbm_to_vmem [thread:$0]  %s3, 256, %s29, [#allocation3], 64, 64, 4
    $region17: #{tpu_custom_call.1} parent=1 // pred_fallthru
      _
    // Predicated region
    $region18: #{tpu_custom_call.1} parent=1 // pred_check
      _
    $region19: #{tpu_custom_call.1} parent=1 // pred_check_branch
      %36 = sbr.rel (0) target = $region21
    $region20: #{tpu_custom_call.1} parent=1 // pred_region
      %s38 = ssub.s32 256, 256
      %39 = vsyncadd [#allocation6], %s38
      %s40 = sshll.u32 [#allocation5], 4
      %s41 = int_to_ptr.vmem [resolvable:$true] %s40
      %46 = dma.hbm_to_vmem [thread:$0]  %s4, 256, %s41, [#allocation6], 64, 64, 4
    $region21: #{tpu_custom_call.1} parent=1 // pred_fallthru
      _
    // Predicated region
    $region22: #{tpu_custom_call.1} parent=1 // pred_check
      _
    $region23: #{tpu_custom_call.1} parent=1 // pred_check_branch
      %48 = sbr.rel (0) target = $region25
    $region24: #{tpu_custom_call.1} parent=1 // pred_region
      %s50 = ssub.s32 256, 256
      %51 = vsyncadd [#allocation6], %s50
      %s52 = sshll.u32 [#allocation7], 4
      %s53 = int_to_ptr.vmem [resolvable:$true] %s52
      %58 = dma.hbm_to_vmem [thread:$0]  %s5, 256, %s53, [#allocation6], 64, 64, 4
    $region25: #{tpu_custom_call.1} parent=1 // pred_fallthru
      _
    // Predicated region
    $region26: #{tpu_custom_call.1} parent=1 // pred_check
      _
    $region27: #{tpu_custom_call.1} parent=1 // pred_check_branch
      %60 = sbr.rel (0) target = $region29
    $region28: #{tpu_custom_call.1} parent=1 // pred_region
      _
    $region29: #{tpu_custom_call.1} parent=1 // pred_fallthru
      _
    // Predicated region
    $region30: #{tpu_custom_call.1} parent=1 // pred_check
      _
    $region31: #{tpu_custom_call.1} parent=1 // pred_check_branch
      %62 = sbr.rel (0) target = $region33
    $region32: #{tpu_custom_call.1} parent=1 // pred_region
      %s64 = ssub.s32 256, 256
      %65 = vsyncadd [#allocation9], %s64
      %s66 = sshll.u32 [#allocation8], 4
      %s67 = int_to_ptr.vmem [resolvable:$true] %s66
      %72 = dma.hbm_to_vmem [thread:$0]  %s7, 256, %s67, [#allocation9], 128, 128, 8
    $region33: #{tpu_custom_call.1} parent=1 // pred_fallthru
      _
    // Predicated region
    $region34: #{tpu_custom_call.1} parent=1 // pred_check
      _
    $region35: #{tpu_custom_call.1} parent=1 // pred_check_branch
      %74 = sbr.rel (0) target = $region37
    $region36: #{tpu_custom_call.1} parent=1 // pred_region
      %75 = dma.done [#allocation3], 256
    $region37: #{tpu_custom_call.1} parent=1 // pred_fallthru
      _
    // Predicated region
    $region38: #{tpu_custom_call.1} parent=1 // pred_check
      _
    $region39: #{tpu_custom_call.1} parent=1 // pred_check_branch
      %77 = sbr.rel (0) target = $region41
    $region40: #{tpu_custom_call.1} parent=1 // pred_region
      %78 = dma.done [#allocation6], 256
    $region41: #{tpu_custom_call.1} parent=1 // pred_fallthru
      _
    // Predicated region
    $region42: #{tpu_custom_call.1} parent=1 // pred_check
      _
    $region43: #{tpu_custom_call.1} parent=1 // pred_check_branch
      %80 = sbr.rel (0) target = $region45
    $region44: #{tpu_custom_call.1} parent=1 // pred_region
      %81 = dma.done [#allocation6], 256
    $region45: #{tpu_custom_call.1} parent=1 // pred_fallthru
      _
    // Predicated region
    $region46: #{tpu_custom_call.1} parent=1 // pred_check
      _
    $region47: #{tpu_custom_call.1} parent=1 // pred_check_branch
      %83 = sbr.rel (0) target = $region49
    $region48: #{tpu_custom_call.1} parent=1 // pred_region
      %84 = dma.done [#allocation9], 256
    $region49: #{tpu_custom_call.1} parent=1 // pred_fallthru
      _
    %v86 = vld [vmem:[%s0] sm:$0xff]
    %v87 = vld [vmem:[%s0 + $0x8] sm:$0xff]
    %v88 = vpack.c.bf16 %v87, %v86
    %v89 = vld [vmem:[#allocation8] sm:$0xff]
    %v90 = vld [vmem:[#allocation8 + $0x8] sm:$0x3]
    %v91 = vld [vmem:[%s1] sm:$0xf]
    %v92 = vld [vmem:[%s1 + $0x4] sm:$0xf]
    %v93 = vld [vmem:[%s1 + $0x8] sm:$0xf]
    %v94 = vld [vmem:[%s1 + $0xc] sm:$0xf]
    %v95 = vlaneseq
    %v96 = vshrl.u32 %v95, 7
    %v97 = vsub.s32 0, %v96
    %v98 = vrot.slane %v89, %v97
    %v103 = vunpack.c.l.b16 %v91
    %v104 = vunpack.c.l.b16 %v92
    %v105 = vunpack.c.l.b16 %v93
    %v106 = vunpack.c.l.b16 %v94
    %v107 = vpack.c.b16 %v104, %v103
    %v108 = vpack.c.b16 %v106, %v105
    %vm111 = vcmask 261120
    %v113 = vsel %vm111, %v88, 0
    %115 = vmatprep.subr.bf16.mxu0 0
    %116 = vmatpush1.bf16.msra.mxu0 %v107
    %117 = vmatprep.subr.bf16.mxu0 0
    %118 = vmatpush1.bf16.msra.mxu0 %v108
    %119 = vmatprep.subr.bf16.mxu0 0
    %120 = vmatpush1.bf16.msra.mxu0 0
    %121 = vmatprep.subr.bf16.mxu0 0
    %122 = vmatpush1.bf16.msra.mxu0 0
    %123 = vmatprep.subr.bf16.mxu0 0
    %124 = vmatpush1.bf16.msra.mxu0 0
    %125 = vmatprep.subr.bf16.mxu0 0
    %126 = vmatpush1.bf16.msra.mxu0 0
    %127 = vmatprep.subr.bf16.mxu0 0
    %128 = vmatpush1.bf16.msra.mxu0 0
    %129 = vmatprep.subr.bf16.mxu0 0
    %130 = vmatpush1.bf16.msra.mxu0 0
    %131 = vmatprep.subr.bf16.mxu0 0
    %132 = vmatpush1.bf16.msra.mxu0 0
    %133 = vmatprep.subr.bf16.mxu0 0
    %134 = vmatpush1.bf16.msra.mxu0 0
    %135 = vmatprep.subr.bf16.mxu0 0
    %136 = vmatpush1.bf16.msra.mxu0 0
    %137 = vmatprep.subr.bf16.mxu0 0
    %138 = vmatpush1.bf16.msra.mxu0 0
    %139 = vmatprep.subr.bf16.mxu0 0
    %140 = vmatpush1.bf16.msra.mxu0 0
    %141 = vmatprep.subr.bf16.mxu0 0
    %142 = vmatpush1.bf16.msra.mxu0 0
    %143 = vmatprep.subr.bf16.mxu0 0
    %144 = vmatpush1.bf16.msra.mxu0 0
    %145 = vmatprep.subr.bf16.mxu0 0
    %146 = vmatpush1.bf16.msra.mxu0 0
    %147 = vmatprep.mubr.bf16.mxu0 0
    %148 = vmatmul.mubr.bf16.gmra.mrb[0].mxu0 %v113
    %v149 = vpop.f32.mrb[0].mxu0
    %v150 = vadd.f32 %v98, %v149
    %v151 = vpop.f32.mrb[0].mxu0
    %v152 = vpop.f32.mrb[0].mxu0
    %v153 = vadd.f32 %v98, %v152
    %v154 = vpop.f32.mrb[0].mxu0
    %155 = vdwg.mxu0
    %v156 = vld [vmem:[%s2] sm:$0xf]
    %v157 = vld [vmem:[%s2 + $0x4] sm:$0xf]
    %v158 = vld [vmem:[%s2 + $0x8] sm:$0xf]
    %v159 = vld [vmem:[%s2 + $0xc] sm:$0xf]
    %v160 = vlaneseq
    %v161 = vshrl.u32 %v160, 7
    %v162 = vsub.s32 1, %v161
    %v163 = vrot.slane %v89, %v162
    %v168 = vunpack.c.l.b16 %v156
    %v169 = vunpack.c.l.b16 %v157
    %v170 = vunpack.c.l.b16 %v158
    %v171 = vunpack.c.l.b16 %v159
    %v172 = vpack.c.b16 %v169, %v168
    %v173 = vpack.c.b16 %v171, %v170
    %176 = vmatprep.subr.bf16.mxu0 0
    %177 = vmatpush1.bf16.msra.mxu0 %v172
    %178 = vmatprep.subr.bf16.mxu0 0
    %179 = vmatpush1.bf16.msra.mxu0 %v173
    %180 = vmatprep.subr.bf16.mxu0 0
    %181 = vmatpush1.bf16.msra.mxu0 0
    %182 = vmatprep.subr.bf16.mxu0 0
    %183 = vmatpush1.bf16.msra.mxu0 0
    %184 = vmatprep.subr.bf16.mxu0 0
    %185 = vmatpush1.bf16.msra.mxu0 0
    %186 = vmatprep.subr.bf16.mxu0 0
    %187 = vmatpush1.bf16.msra.mxu0 0
    %188 = vmatprep.subr.bf16.mxu0 0
    %189 = vmatpush1.bf16.msra.mxu0 0
    %190 = vmatprep.subr.bf16.mxu0 0
    %191 = vmatpush1.bf16.msra.mxu0 0
    %192 = vmatprep.subr.bf16.mxu0 0
    %193 = vmatpush1.bf16.msra.mxu0 0
    %194 = vmatprep.subr.bf16.mxu0 0
    %195 = vmatpush1.bf16.msra.mxu0 0
    %196 = vmatprep.subr.bf16.mxu0 0
    %197 = vmatpush1.bf16.msra.mxu0 0
    %198 = vmatprep.subr.bf16.mxu0 0
    %199 = vmatpush1.bf16.msra.mxu0 0
    %200 = vmatprep.subr.bf16.mxu0 0
    %201 = vmatpush1.bf16.msra.mxu0 0
    %202 = vmatprep.subr.bf16.mxu0 0
    %203 = vmatpush1.bf16.msra.mxu0 0
    %204 = vmatprep.subr.bf16.mxu0 0
    %205 = vmatpush1.bf16.msra.mxu0 0
    %206 = vmatprep.subr.bf16.mxu0 0
    %207 = vmatpush1.bf16.msra.mxu0 0
    %208 = vmatprep.mubr.bf16.mxu0 0
    %209 = vmatmul.mubr.bf16.gmra.mrb[0].mxu0 %v113
    %v210 = vpop.f32.mrb[0].mxu0
    %v211 = vadd.f32 %v163, %v210
    %v212 = vpop.f32.mrb[0].mxu0
    %v213 = vpop.f32.mrb[0].mxu0
    %v214 = vadd.f32 %v163, %v213
    %v215 = vpop.f32.mrb[0].mxu0
    %216 = vdwg.mxu0
    %v217 = vld [vmem:[#allocation2] sm:$0xf]
    %v218 = vld [vmem:[#allocation2 + $0x4] sm:$0xf]
    %v219 = vld [vmem:[#allocation2 + $0x8] sm:$0xf]
    %v220 = vld [vmem:[#allocation2 + $0xc] sm:$0xf]
    %v221 = vlaneseq
    %v222 = vshrl.u32 %v221, 7
    %v223 = vsub.s32 2, %v222
    %v224 = vrot.slane %v89, %v223
    %v229 = vunpack.c.l.b16 %v217
    %v230 = vunpack.c.l.b16 %v218
    %v231 = vunpack.c.l.b16 %v219
    %v232 = vunpack.c.l.b16 %v220
    %v233 = vpack.c.b16 %v230, %v229
    %v234 = vpack.c.b16 %v232, %v231
    %237 = vmatprep.subr.bf16.mxu0 0
    %238 = vmatpush1.bf16.msra.mxu0 %v233
    %239 = vmatprep.subr.bf16.mxu0 0
    %240 = vmatpush1.bf16.msra.mxu0 %v234
    %241 = vmatprep.subr.bf16.mxu0 0
    %242 = vmatpush1.bf16.msra.mxu0 0
    %243 = vmatprep.subr.bf16.mxu0 0
    %244 = vmatpush1.bf16.msra.mxu0 0
    %245 = vmatprep.subr.bf16.mxu0 0
    %246 = vmatpush1.bf16.msra.mxu0 0
    %247 = vmatprep.subr.bf16.mxu0 0
    %248 = vmatpush1.bf16.msra.mxu0 0
    %249 = vmatprep.subr.bf16.mxu0 0
    %250 = vmatpush1.bf16.msra.mxu0 0
    %251 = vmatprep.subr.bf16.mxu0 0
    %252 = vmatpush1.bf16.msra.mxu0 0
    %253 = vmatprep.subr.bf16.mxu0 0
    %254 = vmatpush1.bf16.msra.mxu0 0
    %255 = vmatprep.subr.bf16.mxu0 0
    %256 = vmatpush1.bf16.msra.mxu0 0
    %257 = vmatprep.subr.bf16.mxu0 0
    %258 = vmatpush1.bf16.msra.mxu0 0
    %259 = vmatprep.subr.bf16.mxu0 0
    %260 = vmatpush1.bf16.msra.mxu0 0
    %261 = vmatprep.subr.bf16.mxu0 0
    %262 = vmatpush1.bf16.msra.mxu0 0
    %263 = vmatprep.subr.bf16.mxu0 0
    %264 = vmatpush1.bf16.msra.mxu0 0
    %265 = vmatprep.subr.bf16.mxu0 0
    %266 = vmatpush1.bf16.msra.mxu0 0
    %267 = vmatprep.subr.bf16.mxu0 0
    %268 = vmatpush1.bf16.msra.mxu0 0
    %269 = vmatprep.mubr.bf16.mxu0 0
    %270 = vmatmul.mubr.bf16.gmra.mrb[0].mxu0 %v113
    %v271 = vpop.f32.mrb[0].mxu0
    %v272 = vadd.f32 %v224, %v271
    %v273 = vpop.f32.mrb[0].mxu0
    %v274 = vpop.f32.mrb[0].mxu0
    %v275 = vadd.f32 %v224, %v274
    %v276 = vpop.f32.mrb[0].mxu0
    %277 = vdwg.mxu0
    %v278 = vpack.c.bf16 %v153, %v150
    %v279 = vpack.c.bf16 %v214, %v211
    %v280 = vpack.c.bf16 %v275, %v272
    %v281 = vlaneseq
    %v282 = vshrl.u32 %v281, 7
    %v283 = vadd.s32 %v282, 8
    %v284 = vadd.s32 %v282, 16
    %v285 = vadd.s32 %v282, 24
    %v286 = vadd.s32 %v282, 32
    %v287 = vadd.s32 %v282, 40
    %v288 = vadd.s32 %v282, 48
    %v289 = vadd.s32 %v282, 56
    %v290 = vlaneseq
    %v291 = vand.u32 %v290, 127
    %v292 = vshra.s32 %v282, 4
    %v293 = vshra.s32 %v283, 4
    %v294 = vshra.s32 %v284, 4
    %v295 = vshra.s32 %v285, 4
    %v296 = vshra.s32 %v286, 4
    %v297 = vshra.s32 %v287, 4
    %v298 = vshra.s32 %v288, 4
    %v299 = vshra.s32 %v289, 4
    %v300 = vshra.s32 %v291, 3
    %vm301 = vcmp.eq.s32.totalorder %v292, %v300
    %vm302 = vcmp.eq.s32.totalorder %v293, %v300
    %vm303 = vcmp.eq.s32.totalorder %v294, %v300
    %vm304 = vcmp.eq.s32.totalorder %v295, %v300
    %vm305 = vcmp.eq.s32.totalorder %v296, %v300
    %vm306 = vcmp.eq.s32.totalorder %v297, %v300
    %vm307 = vcmp.eq.s32.totalorder %v298, %v300
    %vm308 = vcmp.eq.s32.totalorder %v299, %v300
    %vm309 = vmpackc.low %vm302, %vm301
    %vm310 = vmpackc.low %vm304, %vm303
    %vm311 = vmpackc.low %vm306, %vm305
    %vm312 = vmpackc.low %vm308, %vm307
    %v313 = vsel %vm309, %v279, 0
    %v314 = vsel %vm310, %v279, 0
    %v315 = vsel %vm311, %v279, 0
    %v316 = vsel %vm312, %v279, 0
    %v317 = vsel %vm309, %v280, 0
    %v318 = vsel %vm310, %v280, 0
    %v319 = vsel %vm311, %v280, 0
    %v320 = vsel %vm312, %v280, 0
    %v321 = vshra.s32 %v282, 3
    %v322 = vshra.s32 %v283, 3
    %v323 = vshra.s32 %v284, 3
    %v324 = vshra.s32 %v285, 3
    %v325 = vshra.s32 %v286, 3
    %v326 = vshra.s32 %v287, 3
    %v327 = vshra.s32 %v288, 3
    %v328 = vshra.s32 %v289, 3
    %vm329 = vcmp.eq.s32.totalorder %v321, %v300
    %vm330 = vcmp.eq.s32.totalorder %v322, %v300
    %vm331 = vcmp.eq.s32.totalorder %v323, %v300
    %vm332 = vcmp.eq.s32.totalorder %v324, %v300
    %vm333 = vcmp.eq.s32.totalorder %v325, %v300
    %vm334 = vcmp.eq.s32.totalorder %v326, %v300
    %vm335 = vcmp.eq.s32.totalorder %v327, %v300
    %vm336 = vcmp.eq.s32.totalorder %v328, %v300
    %v337 = vsel %vm329, 0.0, -1e+30
    %v338 = vsel %vm330, 0.0, -1e+30
    %v339 = vsel %vm331, 0.0, -1e+30
    %v340 = vsel %vm332, 0.0, -1e+30
    %v341 = vsel %vm333, 0.0, -1e+30
    %v342 = vsel %vm334, 0.0, -1e+30
    %v343 = vsel %vm335, 0.0, -1e+30
    %v344 = vsel %vm336, 0.0, -1e+30
    %v346 = vsel %vm111, %v278, 0
    %v349 = vsel %vm111, %v313, 0
    %v352 = vsel %vm111, %v314, 0
    %v355 = vsel %vm111, %v315, 0
    %v358 = vsel %vm111, %v316, 0
    %360 = vmatprep.subr.bf16.mxu0 0
    %361 = vmatpush1.bf16.xpose.msra.mxu0 %v349
    %362 = vmatprep.subr.bf16.mxu0 0
    %363 = vmatpush1.bf16.xpose.msra.mxu0 %v352
    %364 = vmatprep.subr.bf16.mxu0 0
    %365 = vmatpush1.bf16.xpose.msra.mxu0 %v355
    %366 = vmatprep.subr.bf16.mxu0 0
    %367 = vmatpush1.bf16.xpose.msra.mxu0 %v358
    %368 = vmatprep.subr.bf16.mxu0 0
    %369 = vmatpush1.bf16.xpose.msra.mxu0 0
    %370 = vmatprep.subr.bf16.mxu0 0
    %371 = vmatpush1.bf16.xpose.msra.mxu0 0
    %372 = vmatprep.subr.bf16.mxu0 0
    %373 = vmatpush1.bf16.xpose.msra.mxu0 0
    %374 = vmatprep.subr.bf16.mxu0 0
    %375 = vmatpush1.bf16.xpose.msra.mxu0 0
    %376 = vmatprep.subr.bf16.mxu0 0
    %377 = vmatpush1.bf16.xpose.msra.mxu0 0
    %378 = vmatprep.subr.bf16.mxu0 0
    %379 = vmatpush1.bf16.xpose.msra.mxu0 0
    %380 = vmatprep.subr.bf16.mxu0 0
    %381 = vmatpush1.bf16.xpose.msra.mxu0 0
    %382 = vmatprep.subr.bf16.mxu0 0
    %383 = vmatpush1.bf16.xpose.msra.mxu0 0
    %384 = vmatprep.subr.bf16.mxu0 0
    %385 = vmatpush1.bf16.xpose.msra.mxu0 0
    %386 = vmatprep.subr.bf16.mxu0 0
    %387 = vmatpush1.bf16.xpose.msra.mxu0 0
    %388 = vmatprep.subr.bf16.mxu0 0
    %389 = vmatpush1.bf16.xpose.msra.mxu0 0
    %390 = vmatprep.subr.bf16.mxu0 0
    %391 = vmatpush1.bf16.xpose.msra.mxu0 0
    %392 = vmatprep.mubr.bf16.mxu0 0
    %393 = vmatmul.mubr.bf16.gmra.mrb[0].mxu0 %v346
    %v394 = vpop.f32.mrb[0].mxu0
    %v395 = vadd.f32 %v337, %v394
    %v396 = vpop.f32.mrb[0].mxu0
    %v397 = vpop.f32.mrb[0].mxu0
    %v398 = vadd.f32 %v338, %v397
    %v399 = vpop.f32.mrb[0].mxu0
    %400 = vmatprep.mubr.bf16.mxu0 0
    %401 = vmatmul.mubr.bf16.gmra.mrb[0].mxu0 %v346
    %v402 = vpop.f32.mrb[0].mxu0
    %v403 = vadd.f32 %v339, %v402
    %v404 = vpop.f32.mrb[0].mxu0
    %v405 = vpop.f32.mrb[0].mxu0
    %v406 = vadd.f32 %v340, %v405
    %v407 = vpop.f32.mrb[0].mxu0
    %408 = vmatprep.mubr.bf16.mxu0 0
    %409 = vmatmul.mubr.bf16.gmra.mrb[0].mxu0 %v346
    %v410 = vpop.f32.mrb[0].mxu0
    %v411 = vadd.f32 %v341, %v410
    %v412 = vpop.f32.mrb[0].mxu0
    %v413 = vpop.f32.mrb[0].mxu0
    %v414 = vadd.f32 %v342, %v413
    %v415 = vpop.f32.mrb[0].mxu0
    %416 = vmatprep.mubr.bf16.mxu0 0
    %417 = vmatmul.mubr.bf16.gmra.mrb[0].mxu0 %v346
    %v418 = vpop.f32.mrb[0].mxu0
    %v419 = vadd.f32 %v343, %v418
    %v420 = vpop.f32.mrb[0].mxu0
    %v421 = vpop.f32.mrb[0].mxu0
    %v422 = vadd.f32 %v344, %v421
    %v423 = vpop.f32.mrb[0].mxu0
    %424 = vdwg.mxu0
    %vm425 = vcmask 523264
    %v426 = vsel %vm425, %v395, -inf
    %427 = vmax.xlane.f32.xlu0 %v426
    %v428 = vpop.xlane.xlu0 %427
    %v429 = vsel %vm425, %v398, -inf
    %430 = vmax.xlane.f32.xlu0 %v429
    %v431 = vpop.xlane.xlu0 %430
    %v432 = vsel %vm425, %v403, -inf
    %433 = vmax.xlane.f32.xlu0 %v432
    %v434 = vpop.xlane.xlu0 %433
    %v435 = vsel %vm425, %v406, -inf
    %436 = vmax.xlane.f32.xlu0 %v435
    %v437 = vpop.xlane.xlu0 %436
    %v438 = vsel %vm425, %v411, -inf
    %439 = vmax.xlane.f32.xlu0 %v438
    %v440 = vpop.xlane.xlu0 %439
    %v441 = vsel %vm425, %v414, -inf
    %442 = vmax.xlane.f32.xlu0 %v441
    %v443 = vpop.xlane.xlu0 %442
    %v444 = vsel %vm425, %v419, -inf
    %445 = vmax.xlane.f32.xlu0 %v444
    %v446 = vpop.xlane.xlu0 %445
    %v447 = vsel %vm425, %v422, -inf
    %448 = vmax.xlane.f32.xlu0 %v447
    %v449 = vpop.xlane.xlu0 %448
    %v450 = vsub.f32 %v395, %v428
    %v451 = vsub.f32 %v398, %v431
    %v452 = vsub.f32 %v403, %v434
    %v453 = vsub.f32 %v406, %v437
    %v454 = vsub.f32 %v411, %v440
    %v455 = vsub.f32 %v414, %v443
    %v456 = vsub.f32 %v419, %v446
    %v457 = vsub.f32 %v422, %v449
    %v458 = vmul.f32 %v450, 1.442695
    %v459 = vpow.pop %v458
    %v460 = vmul.f32 %v451, 1.442695
    %v461 = vpow.pop %v460
    %v462 = vmul.f32 %v452, 1.442695
    %v463 = vpow.pop %v462
    %v464 = vmul.f32 %v453, 1.442695
    %v465 = vpow.pop %v464
    %v466 = vmul.f32 %v454, 1.442695
    %v467 = vpow.pop %v466
    %v468 = vmul.f32 %v455, 1.442695
    %v469 = vpow.pop %v468
    %v470 = vmul.f32 %v456, 1.442695
    %v471 = vpow.pop %v470
    %v472 = vmul.f32 %v457, 1.442695
    %v473 = vpow.pop %v472
    %v474 = vsel %vm425, %v459, 0.0
    %475 = vadd.xlane.f32.xlu0 %v474
    %v476 = vpop.xlane.xlu0 %475
    %v477 = vsel %vm425, %v461, 0.0
    %478 = vadd.xlane.f32.xlu0 %v477
    %v479 = vpop.xlane.xlu0 %478
    %v480 = vsel %vm425, %v463, 0.0
    %481 = vadd.xlane.f32.xlu0 %v480
    %v482 = vpop.xlane.xlu0 %481
    %v483 = vsel %vm425, %v465, 0.0
    %484 = vadd.xlane.f32.xlu0 %v483
    %v485 = vpop.xlane.xlu0 %484
    %v486 = vsel %vm425, %v467, 0.0
    %487 = vadd.xlane.f32.xlu0 %v486
    %v488 = vpop.xlane.xlu0 %487
    %v489 = vsel %vm425, %v469, 0.0
    %490 = vadd.xlane.f32.xlu0 %v489
    %v491 = vpop.xlane.xlu0 %490
    %v492 = vsel %vm425, %v471, 0.0
    %493 = vadd.xlane.f32.xlu0 %v492
    %v494 = vpop.xlane.xlu0 %493
    %v495 = vsel %vm425, %v473, 0.0
    %496 = vadd.xlane.f32.xlu0 %v495
    %v497 = vpop.xlane.xlu0 %496
    %v498 = vrcp.pop %v476
    %v499 = vrcp.pop %v479
    %v500 = vrcp.pop %v482
    %v501 = vrcp.pop %v485
    %v502 = vrcp.pop %v488
    %v503 = vrcp.pop %v491
    %v504 = vrcp.pop %v494
    %v505 = vrcp.pop %v497
    %v506 = vmul.f32 %v459, %v498
    %v507 = vmul.f32 %v461, %v499
    %v508 = vmul.f32 %v463, %v500
    %v509 = vmul.f32 %v465, %v501
    %v510 = vmul.f32 %v467, %v502
    %v511 = vmul.f32 %v469, %v503
    %v512 = vmul.f32 %v471, %v504
    %v513 = vmul.f32 %v473, %v505
    %v514 = vpack.c.bf16 %v507, %v506
    %v515 = vpack.c.bf16 %v509, %v508
    %v516 = vpack.c.bf16 %v511, %v510
    %v517 = vpack.c.bf16 %v513, %v512
    %v519 = vsel %vm425, %v514, 0
    %v522 = vsel %vm425, %v515, 0
    %v525 = vsel %vm425, %v516, 0
    %v528 = vsel %vm425, %v517, 0
    %530 = vmatprep.subr.bf16.mxu0 0
    %531 = vmatpush1.bf16.msra.mxu0 %v317
    %532 = vmatprep.subr.bf16.mxu0 0
    %533 = vmatpush1.bf16.msra.mxu0 %v318
    %534 = vmatprep.subr.bf16.mxu0 0
    %535 = vmatpush1.bf16.msra.mxu0 %v319
    %536 = vmatprep.subr.bf16.mxu0 0
    %537 = vmatpush1.bf16.msra.mxu0 %v320
    %538 = vmatprep.subr.bf16.mxu0 0
    %539 = vmatpush1.bf16.msra.mxu0 0
    %540 = vmatprep.subr.bf16.mxu0 0
    %541 = vmatpush1.bf16.msra.mxu0 0
    %542 = vmatprep.subr.bf16.mxu0 0
    %543 = vmatpush1.bf16.msra.mxu0 0
    %544 = vmatprep.subr.bf16.mxu0 0
    %545 = vmatpush1.bf16.msra.mxu0 0
    %546 = vmatprep.subr.bf16.mxu0 0
    %547 = vmatpush1.bf16.msra.mxu0 0
    %548 = vmatprep.subr.bf16.mxu0 0
    %549 = vmatpush1.bf16.msra.mxu0 0
    %550 = vmatprep.subr.bf16.mxu0 0
    %551 = vmatpush1.bf16.msra.mxu0 0
    %552 = vmatprep.subr.bf16.mxu0 0
    %553 = vmatpush1.bf16.msra.mxu0 0
    %554 = vmatprep.subr.bf16.mxu0 0
    %555 = vmatpush1.bf16.msra.mxu0 0
    %556 = vmatprep.subr.bf16.mxu0 0
    %557 = vmatpush1.bf16.msra.mxu0 0
    %558 = vmatprep.subr.bf16.mxu0 0
    %559 = vmatpush1.bf16.msra.mxu0 0
    %560 = vmatprep.subr.bf16.mxu0 0
    %561 = vmatpush1.bf16.msra.mxu0 0
    %562 = vmatprep.mubr.bf16.mxu0 0
    %563 = vmatmul.mubr.bf16.gmra.mrb[0].mxu0 %v519
    %v564 = vpop.f32.mrb[0].mxu0
    %v565 = vadd.f32 0.0, %v564
    %v566 = vpop.f32.mrb[0].mxu0
    %v567 = vpop.f32.mrb[0].mxu0
    %v568 = vadd.f32 0.0, %v567
    %v569 = vpop.f32.mrb[0].mxu0
    %570 = vmatprep.mubr.bf16.mxu0 0
    %571 = vmatmul.mubr.bf16.gmra.mrb[0].mxu0 %v522
    %v572 = vpop.f32.mrb[0].mxu0
    %v573 = vadd.f32 0.0, %v572
    %v574 = vpop.f32.mrb[0].mxu0
    %v575 = vpop.f32.mrb[0].mxu0
    %v576 = vadd.f32 0.0, %v575
    %v577 = vpop.f32.mrb[0].mxu0
    %578 = vmatprep.mubr.bf16.mxu0 0
    %579 = vmatmul.mubr.bf16.gmra.mrb[0].mxu0 %v525
    %v580 = vpop.f32.mrb[0].mxu0
    %v581 = vadd.f32 0.0, %v580
    %v582 = vpop.f32.mrb[0].mxu0
    %v583 = vpop.f32.mrb[0].mxu0
    %v584 = vadd.f32 0.0, %v583
    %v585 = vpop.f32.mrb[0].mxu0
    %586 = vmatprep.mubr.bf16.mxu0 0
    %587 = vmatmul.mubr.bf16.gmra.mrb[0].mxu0 %v528
    %v588 = vpop.f32.mrb[0].mxu0
    %v589 = vadd.f32 0.0, %v588
    %v590 = vpop.f32.mrb[0].mxu0
    %v591 = vpop.f32.mrb[0].mxu0
    %v592 = vadd.f32 0.0, %v591
    %v593 = vpop.f32.mrb[0].mxu0
    %594 = vdwg.mxu0
    %v595 = vadd.f32 %v565, %v573
    %v596 = vadd.f32 %v568, %v576
    %v597 = vadd.f32 %v595, %v581
    %v598 = vadd.f32 %v596, %v584
    %v599 = vadd.f32 %v597, %v589
    %v600 = vadd.f32 %v598, %v592
    %v601 = vpack.c.bf16 %v600, %v599
    %v602 = vld [vmem:[#allocation5] sm:$0xf]
    %v603 = vld [vmem:[#allocation5 + $0x4] sm:$0xf]
    %v604 = vld [vmem:[#allocation5 + $0x8] sm:$0xf]
    %v605 = vld [vmem:[#allocation5 + $0xc] sm:$0xf]
    %v606 = vlaneseq
    %v607 = vshrl.u32 %v606, 7
    %v608 = vsub.s32 3, %v607
    %v609 = vrot.slane %v89, %v608
    %v614 = vunpack.c.l.b16 %v602
    %v615 = vunpack.c.l.b16 %v603
    %v616 = vunpack.c.l.b16 %v604
    %v617 = vunpack.c.l.b16 %v605
    %v618 = vpack.c.b16 %v615, %v614
    %v619 = vpack.c.b16 %v617, %v616
    %v623 = vsel %vm111, %v601, 0
    %625 = vmatprep.subr.bf16.mxu0 0
    %626 = vmatpush1.bf16.msra.mxu0 %v618
    %627 = vmatprep.subr.bf16.mxu0 0
    %628 = vmatpush1.bf16.msra.mxu0 %v619
    %629 = vmatprep.subr.bf16.mxu0 0
    %630 = vmatpush1.bf16.msra.mxu0 0
    %631 = vmatprep.subr.bf16.mxu0 0
    %632 = vmatpush1.bf16.msra.mxu0 0
    %633 = vmatprep.subr.bf16.mxu0 0
    %634 = vmatpush1.bf16.msra.mxu0 0
    %635 = vmatprep.subr.bf16.mxu0 0
    %636 = vmatpush1.bf16.msra.mxu0 0
    %637 = vmatprep.subr.bf16.mxu0 0
    %638 = vmatpush1.bf16.msra.mxu0 0
    %639 = vmatprep.subr.bf16.mxu0 0
    %640 = vmatpush1.bf16.msra.mxu0 0
    %641 = vmatprep.subr.bf16.mxu0 0
    %642 = vmatpush1.bf16.msra.mxu0 0
    %643 = vmatprep.subr.bf16.mxu0 0
    %644 = vmatpush1.bf16.msra.mxu0 0
    %645 = vmatprep.subr.bf16.mxu0 0
    %646 = vmatpush1.bf16.msra.mxu0 0
    %647 = vmatprep.subr.bf16.mxu0 0
    %648 = vmatpush1.bf16.msra.mxu0 0
    %649 = vmatprep.subr.bf16.mxu0 0
    %650 = vmatpush1.bf16.msra.mxu0 0
    %651 = vmatprep.subr.bf16.mxu0 0
    %652 = vmatpush1.bf16.msra.mxu0 0
    %653 = vmatprep.subr.bf16.mxu0 0
    %654 = vmatpush1.bf16.msra.mxu0 0
    %655 = vmatprep.subr.bf16.mxu0 0
    %656 = vmatpush1.bf16.msra.mxu0 0
    %657 = vmatprep.mubr.bf16.mxu0 0
    %658 = vmatmul.mubr.bf16.gmra.mrb[0].mxu0 %v623
    %v659 = vpop.f32.mrb[0].mxu0
    %v660 = vadd.f32 %v609, %v659
    %v661 = vpop.f32.mrb[0].mxu0
    %v662 = vpop.f32.mrb[0].mxu0
    %v663 = vadd.f32 %v609, %v662
    %v664 = vpop.f32.mrb[0].mxu0
    %665 = vdwg.mxu0
    %v666 = vadd.f32 %v660, %v86
    %v667 = vadd.f32 %v663, %v87
    %v668 = vsel %vm111, %v666, 0.0
    %669 = vadd.xlane.f32.xlu0 %v668
    %v670 = vpop.xlane.xlu0 %669
    %v671 = vsel %vm111, %v667, 0.0
    %672 = vadd.xlane.f32.xlu0 %v671
    %v673 = vpop.xlane.xlu0 %672
    %v674 = vrcp.pop 32.0
    %v675 = vmul.f32 %v670, %v674
    %v676 = vmul.f32 %v673, %v674
    %v677 = vsub.f32 %v666, %v675
    %v678 = vsub.f32 %v667, %v676
    %v679 = vmul.f32 %v677, %v677
    %v680 = vmul.f32 %v678, %v678
    %v681 = vsel %vm111, %v679, 0.0
    %682 = vadd.xlane.f32.xlu0 %v681
    %v683 = vpop.xlane.xlu0 %682
    %v684 = vsel %vm111, %v680, 0.0
    %685 = vadd.xlane.f32.xlu0 %v684
    %v686 = vpop.xlane.xlu0 %685
    %v687 = vmul.f32 %v683, %v674
    %v688 = vmul.f32 %v686, %v674
    %v689 = vadd.f32 %v687, 1e-05
    %v690 = vadd.f32 %v688, 1e-05
    %v691 = vrsqrt.pop %v689
    %v692 = vrsqrt.pop %v690
    %v693 = vmul.f32 %v677, %v691
    %v694 = vmul.f32 %v678, %v692
    %v695 = vlaneseq
    %v696 = vshrl.u32 %v695, 7
    %v697 = vsub.s32 4, %v696
    %v698 = vrot.slane %v89, %v697
    %v699 = vmul.f32 %v693, %v698
    %v700 = vmul.f32 %v694, %v698
    %v701 = vlaneseq
    %v702 = vshrl.u32 %v701, 7
    %v703 = vsub.s32 5, %v702
    %v704 = vrot.slane %v89, %v703
    %v705 = vadd.f32 %v699, %v704
    %v706 = vadd.f32 %v700, %v704
    %v707 = vpack.c.bf16 %v706, %v705
    %v708 = vld [vmem:[#allocation7] sm:$0xf]
    %v709 = vld [vmem:[#allocation7 + $0x4] sm:$0xf]
    %v710 = vld [vmem:[#allocation7 + $0x8] sm:$0xf]
    %v711 = vld [vmem:[#allocation7 + $0xc] sm:$0xf]
    %v712 = vlaneseq
    %v713 = vshrl.u32 %v712, 7
    %v714 = vsub.s32 6, %v713
    %v715 = vrot.slane %v89, %v714
    %v720 = vunpack.c.l.b16 %v708
    %v721 = vunpack.c.l.b16 %v709
    %v722 = vunpack.c.l.b16 %v710
    %v723 = vunpack.c.l.b16 %v711
    %v724 = vpack.c.b16 %v721, %v720
    %v725 = vpack.c.b16 %v723, %v722
    %v729 = vsel %vm111, %v707, 0
    %731 = vmatprep.subr.bf16.mxu0 0
    %732 = vmatpush1.bf16.msra.mxu0 %v724
    %733 = vmatprep.subr.bf16.mxu0 0
    %734 = vmatpush1.bf16.msra.mxu0 %v725
    %735 = vmatprep.subr.bf16.mxu0 0
    %736 = vmatpush1.bf16.msra.mxu0 0
    %737 = vmatprep.subr.bf16.mxu0 0
    %738 = vmatpush1.bf16.msra.mxu0 0
    %739 = vmatprep.subr.bf16.mxu0 0
    %740 = vmatpush1.bf16.msra.mxu0 0
    %741 = vmatprep.subr.bf16.mxu0 0
    %742 = vmatpush1.bf16.msra.mxu0 0
    %743 = vmatprep.subr.bf16.mxu0 0
    %744 = vmatpush1.bf16.msra.mxu0 0
    %745 = vmatprep.subr.bf16.mxu0 0
    %746 = vmatpush1.bf16.msra.mxu0 0
    %747 = vmatprep.subr.bf16.mxu0 0
    %748 = vmatpush1.bf16.msra.mxu0 0
    %749 = vmatprep.subr.bf16.mxu0 0
    %750 = vmatpush1.bf16.msra.mxu0 0
    %751 = vmatprep.subr.bf16.mxu0 0
    %752 = vmatpush1.bf16.msra.mxu0 0
    %753 = vmatprep.subr.bf16.mxu0 0
    %754 = vmatpush1.bf16.msra.mxu0 0
    %755 = vmatprep.subr.bf16.mxu0 0
    %756 = vmatpush1.bf16.msra.mxu0 0
    %757 = vmatprep.subr.bf16.mxu0 0
    %758 = vmatpush1.bf16.msra.mxu0 0
    %759 = vmatprep.subr.bf16.mxu0 0
    %760 = vmatpush1.bf16.msra.mxu0 0
    %761 = vmatprep.subr.bf16.mxu0 0
    %762 = vmatpush1.bf16.msra.mxu0 0
    %763 = vmatprep.mubr.bf16.mxu0 0
    %764 = vmatmul.mubr.bf16.gmra.mrb[0].mxu0 %v729
    %v765 = vpop.f32.mrb[0].mxu0
    %v766 = vadd.f32 %v715, %v765
    %v767 = vpop.f32.mrb[0].mxu0
    %v768 = vpop.f32.mrb[0].mxu0
    %v769 = vadd.f32 %v715, %v768
    %v770 = vpop.f32.mrb[0].mxu0
    %771 = vdwg.mxu0
    %v772 = vmul.f32 %v766, 0.5
    %v773 = vmul.f32 %v769, 0.5
    %v774 = vmul.f32 %v766, 0.044715
    %v775 = vmul.f32 %v769, 0.044715
    %v776 = vmul.f32 %v774, %v766
    %v777 = vmul.f32 %v775, %v769
    %v778 = vmul.f32 %v776, %v766
    %v779 = vmul.f32 %v777, %v769
    %v780 = vadd.f32 %v766, %v778
    %v781 = vadd.f32 %v769, %v779
    %v782 = vmul.f32 %v780, 0.7978846
    %v783 = vmul.f32 %v781, 0.7978846
    %v784 = vtanh.pop %v782
    %v785 = vtanh.pop %v783
    %v786 = vadd.f32 %v784, 1.0
    %v787 = vadd.f32 %v785, 1.0
    %v788 = vmul.f32 %v772, %v786
    %v789 = vmul.f32 %v773, %v787
    %v790 = vpack.c.bf16 %v789, %v788
    %v791 = vld [vmem:[%s6] sm:$0xf]
    %v792 = vld [vmem:[%s6 + $0x4] sm:$0xf]
    %v793 = vld [vmem:[%s6 + $0x8] sm:$0xf]
    %v794 = vld [vmem:[%s6 + $0xc] sm:$0xf]
    %v795 = vld [vmem:[%s6 + $0x10] sm:$0xf]
    %v796 = vld [vmem:[%s6 + $0x14] sm:$0xf]
    %v797 = vld [vmem:[%s6 + $0x18] sm:$0xf]
    %v798 = vld [vmem:[%s6 + $0x1c] sm:$0xf]
    %v799 = vlaneseq
    %v800 = vshrl.u32 %v799, 7
    %v801 = vsub.s32 7, %v800
    %v802 = vrot.slane %v89, %v801
    %v811 = vunpack.c.l.b16 %v791
    %v812 = vunpack.c.l.b16 %v792
    %v813 = vunpack.c.l.b16 %v793
    %v814 = vunpack.c.l.b16 %v794
    %v815 = vunpack.c.l.b16 %v795
    %v816 = vunpack.c.l.b16 %v796
    %v817 = vunpack.c.l.b16 %v797
    %v818 = vunpack.c.l.b16 %v798
    %v819 = vpack.c.b16 %v812, %v811
    %v820 = vpack.c.b16 %v814, %v813
    %v821 = vpack.c.b16 %v816, %v815
    %v822 = vpack.c.b16 %v818, %v817
    %v828 = vsel %vm425, %v790, 0
    %830 = vmatprep.subr.bf16.mxu0 0
    %831 = vmatpush1.bf16.msra.mxu0 %v819
    %832 = vmatprep.subr.bf16.mxu0 0
    %833 = vmatpush1.bf16.msra.mxu0 %v820
    %834 = vmatprep.subr.bf16.mxu0 0
    %835 = vmatpush1.bf16.msra.mxu0 %v821
    %836 = vmatprep.subr.bf16.mxu0 0
    %837 = vmatpush1.bf16.msra.mxu0 %v822
    %838 = vmatprep.subr.bf16.mxu0 0
    %839 = vmatpush1.bf16.msra.mxu0 0
    %840 = vmatprep.subr.bf16.mxu0 0
    %841 = vmatpush1.bf16.msra.mxu0 0
    %842 = vmatprep.subr.bf16.mxu0 0
    %843 = vmatpush1.bf16.msra.mxu0 0
    %844 = vmatprep.subr.bf16.mxu0 0
    %845 = vmatpush1.bf16.msra.mxu0 0
    %846 = vmatprep.subr.bf16.mxu0 0
    %847 = vmatpush1.bf16.msra.mxu0 0
    %848 = vmatprep.subr.bf16.mxu0 0
    %849 = vmatpush1.bf16.msra.mxu0 0
    %850 = vmatprep.subr.bf16.mxu0 0
    %851 = vmatpush1.bf16.msra.mxu0 0
    %852 = vmatprep.subr.bf16.mxu0 0
    %853 = vmatpush1.bf16.msra.mxu0 0
    %854 = vmatprep.subr.bf16.mxu0 0
    %855 = vmatpush1.bf16.msra.mxu0 0
    %856 = vmatprep.subr.bf16.mxu0 0
    %857 = vmatpush1.bf16.msra.mxu0 0
    %858 = vmatprep.subr.bf16.mxu0 0
    %859 = vmatpush1.bf16.msra.mxu0 0
    %860 = vmatprep.subr.bf16.mxu0 0
    %861 = vmatpush1.bf16.msra.mxu0 0
    %862 = vmatprep.mubr.bf16.mxu0 0
    %863 = vmatmul.mubr.bf16.gmra.mrb[0].mxu0 %v828
    %v864 = vpop.f32.mrb[0].mxu0
    %v865 = vadd.f32 %v802, %v864
    %v866 = vpop.f32.mrb[0].mxu0
    %v867 = vpop.f32.mrb[0].mxu0
    %v868 = vadd.f32 %v802, %v867
    %v869 = vpop.f32.mrb[0].mxu0
    %870 = vdwg.mxu0
    %v871 = vadd.f32 %v865, %v705
    %v872 = vadd.f32 %v868, %v706
    %v873 = vsel %vm111, %v871, 0.0
    %874 = vadd.xlane.f32.xlu0 %v873
    %v875 = vpop.xlane.xlu0 %874
    %v876 = vsel %vm111, %v872, 0.0
    %877 = vadd.xlane.f32.xlu0 %v876
    %v878 = vpop.xlane.xlu0 %877
    %v879 = vmul.f32 %v875, %v674
    %v880 = vmul.f32 %v878, %v674
    %v881 = vsub.f32 %v871, %v879
    %v882 = vsub.f32 %v872, %v880
    %v883 = vmul.f32 %v881, %v881
    %v884 = vmul.f32 %v882, %v882
    %v885 = vsel %vm111, %v883, 0.0
    %886 = vadd.xlane.f32.xlu0 %v885
    %v887 = vpop.xlane.xlu0 %886
    %v888 = vsel %vm111, %v884, 0.0
    %889 = vadd.xlane.f32.xlu0 %v888
    %v890 = vpop.xlane.xlu0 %889
    %v891 = vmul.f32 %v887, %v674
    %v892 = vmul.f32 %v890, %v674
    %v893 = vadd.f32 %v891, 1e-05
    %v894 = vadd.f32 %v892, 1e-05
    %v895 = vrsqrt.pop %v893
    %v896 = vrsqrt.pop %v894
    %v897 = vmul.f32 %v881, %v895
    %v898 = vmul.f32 %v882, %v896
    %v899 = vlaneseq
    %v900 = vshrl.u32 %v899, 7
    %v901 = vsub.s32 0, %v900
    %v902 = vrot.slane %v90, %v901
    %v903 = vmul.f32 %v897, %v902
    %v904 = vmul.f32 %v898, %v902
    %v905 = vlaneseq
    %v906 = vshrl.u32 %v905, 7
    %v907 = vsub.s32 1, %v906
    %v908 = vrot.slane %v90, %v907
    %v909 = vadd.f32 %v903, %v908
    %v910 = vadd.f32 %v904, %v908
    %911 = vst.msk [vmem:[#allocation10] sm:$0xff] %vm111, %v909
    %912 = vst.msk [vmem:[#allocation10 + $0x8] sm:$0xff] %vm111, %v910
    // Predicated region
    $region50: #{tpu_custom_call.1} parent=1 // pred_check
      _
    $region51: #{tpu_custom_call.1} parent=1 // pred_check_branch
      %914 = sbr.rel (0) target = $region53
    $region52: #{tpu_custom_call.1} parent=1 // pred_region
      %s916 = ssub.s32 256, 256
      %917 = vsyncadd [#allocation4], %s916
      %s918 = sshll.u32 [#allocation10], 4
      %s919 = int_to_ptr.vmem [resolvable:$true] %s918
      %924 = dma.vmem_to_hbm [thread:$0]  %s919, 256, %s8, [#allocation4], 128, 128, 8
    $region53: #{tpu_custom_call.1} parent=1 // pred_fallthru
      _
    // Predicated region
    $region54: #{tpu_custom_call.1} parent=1 // pred_check
      _
    $region55: #{tpu_custom_call.1} parent=1 // pred_check_branch
      %926 = sbr.rel (0) target = $region57
    $region56: #{tpu_custom_call.1} parent=1 // pred_region
      %927 = dma.done [#allocation4], 256
    $region57: #{tpu_custom_call.1} parent=1 // pred_fallthru
      _
    %928 = vsyncpa [#allocation3], 1
    %929 = vsyncpa [#allocation6], 1
    %930 = vsyncpa [#allocation9], 1
    %931 = vsyncpa [#allocation4], 1

</llo_original>
